<compile_context>
chip_gen: v7x
topology: tpu7x:2x2x1
jax: 0.10.0
libtpu: 0.0.40
codegen_flags: <defaults>
</compile_context>

<pallas_src>
import jax
import jax.numpy as jnp
from jax.experimental import pallas as pl
from jax.experimental.pallas import tpu as pltpu

LANE = 128
SUBLANE = 8


def discriminator_kernel(x_ref, w1_ref, b1_ref, w2_ref, b2_ref, w3_ref, b3_ref,
                         o_ref):
    # x tile arrives in its input dtype (f32 here) and is cast to the weight
    # dtype (bf16) in-kernel -- a VPU op hidden under the DMA.  Dots
    # accumulate in f32 on the MXU; biases are f32 and added post-accumulate.
    x = x_ref[...].astype(w1_ref.dtype)

    # Layer 1: Linear + LeakyReLU(0.3)
    h1 = jnp.dot(x, w1_ref[...], preferred_element_type=jnp.float32)
    h1 = h1 + b1_ref[...]                       # (1, hidden_pad) broadcast
    h1 = jnp.maximum(h1, 0.3 * h1)              # leaky relu: vmul + vmax

    # Layer 2: Linear + LeakyReLU(0.3)
    h2 = jnp.dot(h1.astype(w2_ref.dtype), w2_ref[...],
                 preferred_element_type=jnp.float32)
    h2 = h2 + b2_ref[...]
    h2 = jnp.maximum(h2, 0.3 * h2)

    # Layer 3: Linear + Sigmoid (clamp is cheap NaN insurance; exp + approx
    # reciprocal both land on the EUP slot, no VPU divide).
    h3 = jnp.dot(h2.astype(w3_ref.dtype), w3_ref[...],
                 preferred_element_type=jnp.float32)
    h3 = h3 + b3_ref[...]
    h3 = jnp.clip(h3, -30.0, 30.0)
    o_ref[...] = pl.reciprocal(1.0 + jnp.exp(-h3), approx=True).astype(o_ref.dtype)


def _round_up(v, m):
    return ((v + m - 1) // m) * m


def prepare_params(params, *, compute_dtype=jnp.bfloat16):
    """One-time param prep: cast weights to bf16, biases to f32, and zero-pad
    the hidden dim to a full 128-lane width (exact: leaky(0)=0 and zero weight
    rows/cols contribute nothing)."""
    w1, b1, w2, b2, w3, b3 = params
    in_dim, hidden = w1.shape
    out_dim = w3.shape[1]
    hp = _round_up(hidden, LANE)

    w1p = jnp.zeros((in_dim, hp), compute_dtype).at[:, :hidden].set(
        w1.astype(compute_dtype))
    w2p = jnp.zeros((hp, hp), compute_dtype).at[:hidden, :hidden].set(
        w2.astype(compute_dtype))
    w3p = jnp.zeros((hp, out_dim), compute_dtype).at[:hidden, :].set(
        w3.astype(compute_dtype))
    b1p = jnp.zeros((1, hp), jnp.float32).at[:, :hidden].set(
        b1.reshape(1, -1).astype(jnp.float32))
    b2p = jnp.zeros((1, hp), jnp.float32).at[:, :hidden].set(
        b2.reshape(1, -1).astype(jnp.float32))
    b3p = b3.reshape(1, out_dim).astype(jnp.float32)
    return (w1p, b1p, w2p, b2p, w3p, b3p)


def discriminator_forward(x, prepared_params, *, block_m=2048):
    """sigmoid(leaky(leaky(x@W1+b1)@W2+b2)@W3+b3), leaky slope 0.3.
    `prepared_params` must come from prepare_params()."""
    w1, b1, w2, b2, w3, b3 = prepared_params
    batch, in_dim = x.shape
    hidden_pad = w1.shape[1]
    out_dim = w3.shape[1]

    # Batch tile: multiple of 8 sublanes, capped at block_m.  If the whole
    # batch fits in one tile but is large enough, split it so the grid has at
    # least 2 steps and the "parallel" axis can shard across v7x's 2 TCs.
    tm = min(block_m, _round_up(batch, SUBLANE))
    if pl.cdiv(batch, tm) < 2 and batch >= 2 * SUBLANE:
        tm = _round_up(pl.cdiv(batch, 2), SUBLANE)
    grid = (pl.cdiv(batch, tm),)   # ragged last block handled by Pallas masking

    nbytes = lambda a: a.size * a.dtype.itemsize
    cost = pl.CostEstimate(
        flops=2 * batch * (in_dim * hidden_pad
                           + hidden_pad * hidden_pad
                           + hidden_pad * out_dim),
        transcendentals=batch * out_dim,
        bytes_accessed=(nbytes(x)
                        + sum(nbytes(a) for a in prepared_params)
                        + batch * out_dim * 4),
    )

    # Weights/biases: full-array blocks with constant index maps -> pinned in
    # VMEM for the whole grid (no re-DMA per batch tile).
    resident = lambda a: pl.BlockSpec(a.shape, lambda i: (0,) * a.ndim)

    out = pl.pallas_call(
        discriminator_kernel,
        out_shape=jax.ShapeDtypeStruct((batch, out_dim), jnp.float32),
        grid=grid,
        in_specs=[
            pl.BlockSpec((tm, in_dim), lambda i: (i, 0)),   # streamed x tiles
            resident(w1), resident(b1),
            resident(w2), resident(b2),
            resident(w3), resident(b3),
        ],
        # Block last dim equals the full array last dim (=out_dim), so no
        # 128-lane pad is required; masked vst beats 16x extra HBM bytes.
        out_specs=pl.BlockSpec((tm, out_dim), lambda i: (i, 0)),
        compiler_params=pltpu.CompilerParams(
            # Independent batch tiles -> shard grid across v7x's 2 TCs.
            dimension_semantics=("parallel",),
            # Explicit scoped-VMEM headroom (matters on v5e's 16 MiB default
            # if block_m is raised further); footprint here is only a few MB.
            vmem_limit_bytes=32 * 1024 * 1024,
        ),
        cost_estimate=cost,
    )(x, w1, b1, w2, b2, w3, b3)

    return out


def init_params(key, in_dim, hidden_dim, out_dim):
    # Deterministic synthetic init (PyTorch-like uniform fan-in scaling).
    ks = jax.random.split(key, 6)

    def lin(kw, kb, fan_in, fan_out):
        bound = 1.0 / jnp.sqrt(fan_in)
        w = jax.random.uniform(kw, (fan_in, fan_out), jnp.float32,
                               minval=-bound, maxval=bound)
        b = jax.random.uniform(kb, (1, fan_out), jnp.float32,
                               minval=-bound, maxval=bound)
        return w, b

    w1, b1 = lin(ks[0], ks[1], in_dim, hidden_dim)
    w2, b2 = lin(ks[2], ks[3], hidden_dim, hidden_dim)
    w3, b3 = lin(ks[4], ks[5], hidden_dim, out_dim)
    return (w1, b1, w2, b2, w3, b3)


def reference_forward(x, params, compute_dtype=jnp.bfloat16):
    # Pure-JAX reference mirroring the kernel's bf16-in / f32-accumulate math.
    w1, b1, w2, b2, w3, b3 = params
    c = lambda a: a.astype(compute_dtype).astype(jnp.float32)
    leaky = lambda t: jnp.maximum(t, 0.3 * t)
    h1 = leaky(c(x) @ c(w1) + b1)
    h2 = leaky(c(h1) @ c(w2) + b2)
    h3 = c(h2) @ c(w3) + b3
    return jax.nn.sigmoid(h3)


if __name__ == "__main__":
    in_dim, hidden_dim, out_dim = 32, 64, 8
    batch = 8  # tiny demo size; the tiling pays off at realistic GAN batches

    key = jax.random.PRNGKey(0)
    kx, kp = jax.random.split(key)
    x = jax.random.normal(kx, (batch, in_dim), jnp.float32)
    params = init_params(kp, in_dim, hidden_dim, out_dim)

    # One-time param prep (cast + hidden padding) — outside the per-step path.
    prepared = prepare_params(params)

    out = jax.block_until_ready(discriminator_forward(x, prepared))
    ref = reference_forward(x, params)

    assert out.shape == (batch, out_dim)
    assert jnp.allclose(out, ref, atol=1e-2, rtol=1e-2), (
        f"max abs err {jnp.max(jnp.abs(out - ref))}")

    print("KERNEL_OK")
</pallas_src>

<mosaic_0001>
module attributes {stable_mosaic.version = 11 : i64} {
  func.func @discriminator_kernel(%arg0: i32, %arg1: memref<8x32xf32, #tpu.memory_space<vmem>>, %arg2: memref<32x128xbf16, #tpu.memory_space<vmem>>, %arg3: memref<1x128xf32, #tpu.memory_space<vmem>>, %arg4: memref<128x128xbf16, #tpu.memory_space<vmem>>, %arg5: memref<1x128xf32, #tpu.memory_space<vmem>>, %arg6: memref<128x8xbf16, #tpu.memory_space<vmem>>, %arg7: memref<1x8xf32, #tpu.memory_space<vmem>>, %arg8: memref<8x8xf32, #tpu.memory_space<vmem>>) attributes {dimension_semantics = [#tpu.dimension_semantics<parallel>], iteration_bounds = array<i64: 1>, scalar_prefetch = 0 : i64, scratch_operands = 0 : i64, tpu.core_type = #tpu.core_type<tc>, window_params = [{transform_indices = @transform_0, window_bounds = array<i64: 8, 32>}, {pipeline_mode = #tpu.pipeline_mode<synchronous>, transform_indices = @transform_1, window_bounds = array<i64: 32, 128>}, {pipeline_mode = #tpu.pipeline_mode<synchronous>, transform_indices = @transform_2, window_bounds = array<i64: 1, 128>}, {pipeline_mode = #tpu.pipeline_mode<synchronous>, transform_indices = @transform_3, window_bounds = array<i64: 128, 128>}, {pipeline_mode = #tpu.pipeline_mode<synchronous>, transform_indices = @transform_4, window_bounds = array<i64: 1, 128>}, {pipeline_mode = #tpu.pipeline_mode<synchronous>, transform_indices = @transform_5, window_bounds = array<i64: 128, 8>}, {pipeline_mode = #tpu.pipeline_mode<synchronous>, transform_indices = @transform_6, window_bounds = array<i64: 1, 8>}, {transform_indices = @transform_7, window_bounds = array<i64: 8, 8>}]} {
    %c0 = arith.constant 0 : index
    %c0_0 = arith.constant 0 : index
    %0 = vector.load %arg1[%c0, %c0_0] : memref<8x32xf32, #tpu.memory_space<vmem>>, vector<8x32xf32>
    %1 = arith.truncf %0 : vector<8x32xf32> to vector<8x32xbf16>
    %c0_1 = arith.constant 0 : index
    %c0_2 = arith.constant 0 : index
    %2 = vector.load %arg2[%c0_1, %c0_2] : memref<32x128xbf16, #tpu.memory_space<vmem>>, vector<32x128xbf16>
    %cst = arith.constant dense<0.000000e+00> : vector<8x128xf32>
    %3 = tpu.matmul %1, %2, %cst {dimension_numbers = #tpu.dot_dimension_numbers<[1], [0], [0], [1], [0, 0, 1, 1], [], []>} : vector<8x32xbf16>, vector<32x128xbf16>, vector<8x128xf32> -> vector<8x128xf32>
    %c0_3 = arith.constant 0 : index
    %c0_4 = arith.constant 0 : index
    %4 = vector.load %arg3[%c0_3, %c0_4] : memref<1x128xf32, #tpu.memory_space<vmem>>, vector<1x128xf32>
    %5 = vector.broadcast %4 : vector<1x128xf32> to vector<8x128xf32>
    %6 = arith.addf %3, %5 : vector<8x128xf32>
    %cst_5 = arith.constant 3.000000e-01 : f32
    %7 = vector.broadcast %cst_5 : f32 to vector<8x128xf32>
    %8 = arith.mulf %7, %6 : vector<8x128xf32>
    %9 = arith.maximumf %6, %8 : vector<8x128xf32>
    %10 = arith.truncf %9 : vector<8x128xf32> to vector<8x128xbf16>
    %c0_6 = arith.constant 0 : index
    %c0_7 = arith.constant 0 : index
    %11 = vector.load %arg4[%c0_6, %c0_7] : memref<128x128xbf16, #tpu.memory_space<vmem>>, vector<128x128xbf16>
    %cst_8 = arith.constant dense<0.000000e+00> : vector<8x128xf32>
    %12 = tpu.matmul %10, %11, %cst_8 {dimension_numbers = #tpu.dot_dimension_numbers<[1], [0], [0], [1], [0, 0, 1, 1], [], []>} : vector<8x128xbf16>, vector<128x128xbf16>, vector<8x128xf32> -> vector<8x128xf32>
    %c0_9 = arith.constant 0 : index
    %c0_10 = arith.constant 0 : index
    %13 = vector.load %arg5[%c0_9, %c0_10] : memref<1x128xf32, #tpu.memory_space<vmem>>, vector<1x128xf32>
    %14 = vector.broadcast %13 : vector<1x128xf32> to vector<8x128xf32>
    %15 = arith.addf %12, %14 : vector<8x128xf32>
    %cst_11 = arith.constant 3.000000e-01 : f32
    %16 = vector.broadcast %cst_11 : f32 to vector<8x128xf32>
    %17 = arith.mulf %16, %15 : vector<8x128xf32>
    %18 = arith.maximumf %15, %17 : vector<8x128xf32>
    %19 = arith.truncf %18 : vector<8x128xf32> to vector<8x128xbf16>
    %c0_12 = arith.constant 0 : index
    %c0_13 = arith.constant 0 : index
    %20 = vector.load %arg6[%c0_12, %c0_13] : memref<128x8xbf16, #tpu.memory_space<vmem>>, vector<128x8xbf16>
    %cst_14 = arith.constant dense<0.000000e+00> : vector<8x8xf32>
    %21 = tpu.matmul %19, %20, %cst_14 {dimension_numbers = #tpu.dot_dimension_numbers<[1], [0], [0], [1], [0, 0, 1, 1], [], []>} : vector<8x128xbf16>, vector<128x8xbf16>, vector<8x8xf32> -> vector<8x8xf32>
    %c0_15 = arith.constant 0 : index
    %c0_16 = arith.constant 0 : index
    %22 = vector.load %arg7[%c0_15, %c0_16] : memref<1x8xf32, #tpu.memory_space<vmem>>, vector<1x8xf32>
    %23 = vector.broadcast %22 : vector<1x8xf32> to vector<8x8xf32>
    %24 = arith.addf %21, %23 : vector<8x8xf32>
    %cst_17 = arith.constant -3.000000e+01 : f32
    %cst_18 = arith.constant 3.000000e+01 : f32
    %25 = vector.broadcast %cst_17 : f32 to vector<8x8xf32>
    %26 = arith.maximumf %25, %24 : vector<8x8xf32>
    %27 = vector.broadcast %cst_18 : f32 to vector<8x8xf32>
    %28 = arith.minimumf %27, %26 : vector<8x8xf32>
    %cst_19 = arith.constant 0.000000e+00 : f32
    %29 = vector.broadcast %cst_19 : f32 to vector<8x8xf32>
    %30 = arith.subf %29, %28 : vector<8x8xf32>
    %31 = math.exp %30 : vector<8x8xf32>
    %cst_20 = arith.constant 1.000000e+00 : f32
    %32 = vector.broadcast %cst_20 : f32 to vector<8x8xf32>
    %33 = arith.addf %32, %31 : vector<8x8xf32>
    %34 = tpu.reciprocal %33 {approx = true} : vector<8x8xf32> -> vector<8x8xf32>
    %c0_21 = arith.constant 0 : index
    %c0_22 = arith.constant 0 : index
    %35 = vector.load %arg8[%c0_21, %c0_22] : memref<8x8xf32, #tpu.memory_space<vmem>>, vector<8x8xf32>
    tpu.vector_store %arg8[%c0_21, %c0_22], %34 {strides = array<i32>} : memref<8x8xf32, #tpu.memory_space<vmem>>, vector<8x8xf32>,
    return
  }
  func.func @transform_0(%arg0: i32) -> (i32, i32) {
    %c0_i32 = arith.constant 0 : i32
    %c0_i32_0 = arith.constant 0 : i32
    return %arg0, %c0_i32 : i32, i32
  }
  func.func @transform_1(%arg0: i32) -> (i32, i32) {
    %c0_i32 = arith.constant 0 : i32
    %c0_i32_0 = arith.constant 0 : i32
    %c0_i32_1 = arith.constant 0 : i32
    return %c0_i32, %c0_i32_0 : i32, i32
  }
  func.func @transform_2(%arg0: i32) -> (i32, i32) {
    %c0_i32 = arith.constant 0 : i32
    %c0_i32_0 = arith.constant 0 : i32
    %c0_i32_1 = arith.constant 0 : i32
    return %c0_i32, %c0_i32_0 : i32, i32
  }
  func.func @transform_3(%arg0: i32) -> (i32, i32) {
    %c0_i32 = arith.constant 0 : i32
    %c0_i32_0 = arith.constant 0 : i32
    %c0_i32_1 = arith.constant 0 : i32
    return %c0_i32, %c0_i32_0 : i32, i32
  }
  func.func @transform_4(%arg0: i32) -> (i32, i32) {
    %c0_i32 = arith.constant 0 : i32
    %c0_i32_0 = arith.constant 0 : i32
    %c0_i32_1 = arith.constant 0 : i32
    return %c0_i32, %c0_i32_0 : i32, i32
  }
  func.func @transform_5(%arg0: i32) -> (i32, i32) {
    %c0_i32 = arith.constant 0 : i32
    %c0_i32_0 = arith.constant 0 : i32
    %c0_i32_1 = arith.constant 0 : i32
    return %c0_i32, %c0_i32_0 : i32, i32
  }
  func.func @transform_6(%arg0: i32) -> (i32, i32) {
    %c0_i32 = arith.constant 0 : i32
    %c0_i32_0 = arith.constant 0 : i32
    %c0_i32_1 = arith.constant 0 : i32
    return %c0_i32, %c0_i32_0 : i32, i32
  }
  func.func @transform_7(%arg0: i32) -> (i32, i32) {
    %c0_i32 = arith.constant 0 : i32
    %c0_i32_0 = arith.constant 0 : i32
    return %arg0, %c0_i32 : i32, i32
  }
}

</mosaic_0001>

<llo_original>
// kernel: tpu_custom_call.1
$region0: #{tpu_custom_call.1}
  #allocation0 [shape = 'u32[]', space=smem, size = 0x4, offset = 0x4, fixed_abs, tag = 'smem constant byte address 0x4 - core index']
  #allocation1 [shape = 'u32[144,128]{1,0:T(1,128)}', space=vmem, size = 0x12000, scoped, tag = 'internal scratch']
  %s0 = inlined_call_operand.vmem [shape: f32[8,32], index: 0, kind: input, shape index: {}]
  %s1 = inlined_call_operand.hbm [shape: bf16[32,128], index: 1, kind: input, shape index: {}]
  %s2 = inlined_call_operand.vmem [shape: f32[1,128], index: 2, kind: input, shape index: {}]
  %s3 = inlined_call_operand.vmem [shape: bf16[128,128], index: 3, kind: input, shape index: {}]
  %s4 = inlined_call_operand.vmem [shape: f32[1,128], index: 4, kind: input, shape index: {}]
  %s5 = inlined_call_operand.vmem [shape: bf16[128,8], index: 5, kind: input, shape index: {}]
  %s6 = inlined_call_operand.vmem [shape: f32[1,8], index: 6, kind: input, shape index: {}]
  %s7 = inlined_call_operand.hbm [shape: f32[8,8], index: 7, kind: output, shape index: {}]
  %s8 = sld [smem:[#allocation0]]
  $region42: #{tpu_custom_call.1} parent=0
    _
  %s10 = ssub.s32 1, %s8
  %s11 = scalar_select 0, %s10, %s8
  $region1: #{tpu_custom_call.1} parent=0
    #allocation2 [shape = 'u8[8192]{0}', space=vmem, size = 0x2000, scoped, tag = 'input window, operand 1, single buffered']
    #allocation3 [shape = 's32[1]{0}', space=sflag, size = 0x4, scoped, tag = 'scoped memory for tpu_custom_call.1']
    #allocation4 [shape = 's32[1]{0}', space=sflag, size = 0x4, scoped, tag = 'scoped memory for tpu_custom_call.1']
    #allocation5 [shape = 'u8[4096]{0}', space=vmem, size = 0x1000, scoped, tag = 'output window, operand 0, single buffered']
    %12 = vsyncpa [#allocation3], 0
    %13 = vsyncpa [#allocation4], 0
    // Predicated region
    $region2: #{tpu_custom_call.1} parent=1 // pred_check
      _
    $region3: #{tpu_custom_call.1} parent=1 // pred_check_branch
      %15 = sbr.rel (0) target = $region5
    $region4: #{tpu_custom_call.1} parent=1 // pred_region
      _
    $region5: #{tpu_custom_call.1} parent=1 // pred_fallthru
      _
    // Predicated region
    $region6: #{tpu_custom_call.1} parent=1 // pred_check
      _
    $region7: #{tpu_custom_call.1} parent=1 // pred_check_branch
      %17 = sbr.rel (0) target = $region9
    $region8: #{tpu_custom_call.1} parent=1 // pred_region
      %s19 = ssub.s32 256, 256
      %20 = vsyncadd [#allocation3], %s19
      %s21 = sshll.u32 [#allocation2], 4
      %s22 = int_to_ptr.vmem [resolvable:$true] %s21
      %27 = dma.hbm_to_vmem [thread:$0]  %s1, 256, %s22, [#allocation3], 64, 64, 4
    $region9: #{tpu_custom_call.1} parent=1 // pred_fallthru
      _
    // Predicated region
    $region10: #{tpu_custom_call.1} parent=1 // pred_check
      _
    $region11: #{tpu_custom_call.1} parent=1 // pred_check_branch
      %29 = sbr.rel (0) target = $region13
    $region12: #{tpu_custom_call.1} parent=1 // pred_region
      _
    $region13: #{tpu_custom_call.1} parent=1 // pred_fallthru
      _
    // Predicated region
    $region14: #{tpu_custom_call.1} parent=1 // pred_check
      _
    $region15: #{tpu_custom_call.1} parent=1 // pred_check_branch
      %31 = sbr.rel (0) target = $region17
    $region16: #{tpu_custom_call.1} parent=1 // pred_region
      _
    $region17: #{tpu_custom_call.1} parent=1 // pred_fallthru
      _
    // Predicated region
    $region18: #{tpu_custom_call.1} parent=1 // pred_check
      _
    $region19: #{tpu_custom_call.1} parent=1 // pred_check_branch
      %33 = sbr.rel (0) target = $region21
    $region20: #{tpu_custom_call.1} parent=1 // pred_region
      _
    $region21: #{tpu_custom_call.1} parent=1 // pred_fallthru
      _
    // Predicated region
    $region22: #{tpu_custom_call.1} parent=1 // pred_check
      _
    $region23: #{tpu_custom_call.1} parent=1 // pred_check_branch
      %35 = sbr.rel (0) target = $region25
    $region24: #{tpu_custom_call.1} parent=1 // pred_region
      _
    $region25: #{tpu_custom_call.1} parent=1 // pred_fallthru
      _
    // Predicated region
    $region26: #{tpu_custom_call.1} parent=1 // pred_check
      _
    $region27: #{tpu_custom_call.1} parent=1 // pred_check_branch
      %37 = sbr.rel (0) target = $region29
    $region28: #{tpu_custom_call.1} parent=1 // pred_region
      _
    $region29: #{tpu_custom_call.1} parent=1 // pred_fallthru
      _
    // Predicated region
    $region30: #{tpu_custom_call.1} parent=1 // pred_check
      _
    $region31: #{tpu_custom_call.1} parent=1 // pred_check_branch
      %39 = sbr.rel (0) target = $region33
    $region32: #{tpu_custom_call.1} parent=1 // pred_region
      %40 = dma.done [#allocation3], 256
    $region33: #{tpu_custom_call.1} parent=1 // pred_fallthru
      _
    %v42 = vld [vmem:[%s0] sm:$0xff]
    %v43 = vpack.c.bf16 %v42, %v42
    %v44 = vld [vmem:[#allocation2] sm:$0xf]
    %v45 = vld [vmem:[#allocation2 + $0x4] sm:$0xf]
    %v46 = vld [vmem:[#allocation2 + $0x8] sm:$0xf]
    %v47 = vld [vmem:[#allocation2 + $0xc] sm:$0xf]
    %v48 = vld [vmem:[%s2] sm:$0x1]
    %v50 = vlaneseq
    %v51 = vshrl.u32 %v50, 7
    %v52 = vsub.s32 0, %v51
    %v53 = vrot.slane %v48, %v52
    %v59 = vunpack.c.l.b16 %v44
    %v60 = vunpack.c.l.b16 %v45
    %v61 = vunpack.c.l.b16 %v46
    %v62 = vunpack.c.l.b16 %v47
    %v63 = vpack.c.b16 %v60, %v59
    %v64 = vpack.c.b16 %v62, %v61
    %vm67 = vcmask 261120
    %v69 = vsel %vm67, %v43, 0
    %71 = vmatprep.subr.bf16.mxu0 0
    %72 = vmatpush1.bf16.msra.mxu0 %v63
    %73 = vmatprep.subr.bf16.mxu0 0
    %74 = vmatpush1.bf16.msra.mxu0 %v64
    %75 = vmatprep.subr.bf16.mxu0 0
    %76 = vmatpush1.bf16.msra.mxu0 0
    %77 = vmatprep.subr.bf16.mxu0 0
    %78 = vmatpush1.bf16.msra.mxu0 0
    %79 = vmatprep.subr.bf16.mxu0 0
    %80 = vmatpush1.bf16.msra.mxu0 0
    %81 = vmatprep.subr.bf16.mxu0 0
    %82 = vmatpush1.bf16.msra.mxu0 0
    %83 = vmatprep.subr.bf16.mxu0 0
    %84 = vmatpush1.bf16.msra.mxu0 0
    %85 = vmatprep.subr.bf16.mxu0 0
    %86 = vmatpush1.bf16.msra.mxu0 0
    %87 = vmatprep.subr.bf16.mxu0 0
    %88 = vmatpush1.bf16.msra.mxu0 0
    %89 = vmatprep.subr.bf16.mxu0 0
    %90 = vmatpush1.bf16.msra.mxu0 0
    %91 = vmatprep.subr.bf16.mxu0 0
    %92 = vmatpush1.bf16.msra.mxu0 0
    %93 = vmatprep.subr.bf16.mxu0 0
    %94 = vmatpush1.bf16.msra.mxu0 0
    %95 = vmatprep.subr.bf16.mxu0 0
    %96 = vmatpush1.bf16.msra.mxu0 0
    %97 = vmatprep.subr.bf16.mxu0 0
    %98 = vmatpush1.bf16.msra.mxu0 0
    %99 = vmatprep.subr.bf16.mxu0 0
    %100 = vmatpush1.bf16.msra.mxu0 0
    %101 = vmatprep.subr.bf16.mxu0 0
    %102 = vmatpush1.bf16.msra.mxu0 0
    %103 = vmatprep.mubr.bf16.mxu0 0
    %104 = vmatmul.mubr.bf16.gmra.mrb[0].mxu0 %v69
    %v105 = vpop.f32.mrb[0].mxu0
    %v106 = vadd.f32 %v53, %v105
    %v107 = vpop.f32.mrb[0].mxu0
    %v108 = vpop.f32.mrb[0].mxu0
    %v109 = vpop.f32.mrb[0].mxu0
    %110 = vdwg.mxu0
    %v111 = vmul.f32 %v106, 0.3
    %v112 = vmax.f32 %v106, %v111
    %v113 = vpack.c.bf16 %v112, %v112
    %v114 = vld [vmem:[%s3] sm:$0xf]
    %v115 = vld [vmem:[%s3 + $0x4] sm:$0xf]
    %v116 = vld [vmem:[%s3 + $0x8] sm:$0xf]
    %v117 = vld [vmem:[%s3 + $0xc] sm:$0xf]
    %v118 = vld [vmem:[%s3 + $0x10] sm:$0xf]
    %v119 = vld [vmem:[%s3 + $0x14] sm:$0xf]
    %v120 = vld [vmem:[%s3 + $0x18] sm:$0xf]
    %v121 = vld [vmem:[%s3 + $0x1c] sm:$0xf]
    %v122 = vld [vmem:[%s3 + $0x20] sm:$0xf]
    %v123 = vld [vmem:[%s3 + $0x24] sm:$0xf]
    %v124 = vld [vmem:[%s3 + $0x28] sm:$0xf]
    %v125 = vld [vmem:[%s3 + $0x2c] sm:$0xf]
    %v126 = vld [vmem:[%s3 + $0x30] sm:$0xf]
    %v127 = vld [vmem:[%s3 + $0x34] sm:$0xf]
    %v128 = vld [vmem:[%s3 + $0x38] sm:$0xf]
    %v129 = vld [vmem:[%s3 + $0x3c] sm:$0xf]
    %v130 = vld [vmem:[%s4] sm:$0x1]
    %v132 = vlaneseq
    %v133 = vshrl.u32 %v132, 7
    %v134 = vsub.s32 0, %v133
    %v135 = vrot.slane %v130, %v134
    %v153 = vunpack.c.l.b16 %v114
    %v154 = vunpack.c.l.b16 %v115
    %v155 = vunpack.c.l.b16 %v116
    %v156 = vunpack.c.l.b16 %v117
    %v157 = vunpack.c.l.b16 %v118
    %v158 = vunpack.c.l.b16 %v119
    %v159 = vunpack.c.l.b16 %v120
    %v160 = vunpack.c.l.b16 %v121
    %v161 = vunpack.c.l.b16 %v122
    %v162 = vunpack.c.l.b16 %v123
    %v163 = vunpack.c.l.b16 %v124
    %v164 = vunpack.c.l.b16 %v125
    %v165 = vunpack.c.l.b16 %v126
    %v166 = vunpack.c.l.b16 %v127
    %v167 = vunpack.c.l.b16 %v128
    %v168 = vunpack.c.l.b16 %v129
    %v169 = vpack.c.b16 %v154, %v153
    %v170 = vpack.c.b16 %v156, %v155
    %v171 = vpack.c.b16 %v158, %v157
    %v172 = vpack.c.b16 %v160, %v159
    %v173 = vpack.c.b16 %v162, %v161
    %v174 = vpack.c.b16 %v164, %v163
    %v175 = vpack.c.b16 %v166, %v165
    %v176 = vpack.c.b16 %v168, %v167
    %185 = vmatprep.subr.bf16.mxu0 0
    %186 = vmatpush1.bf16.msra.mxu0 %v169
    %187 = vmatprep.subr.bf16.mxu0 0
    %188 = vmatpush1.bf16.msra.mxu0 %v170
    %189 = vmatprep.subr.bf16.mxu0 0
    %190 = vmatpush1.bf16.msra.mxu0 %v171
    %191 = vmatprep.subr.bf16.mxu0 0
    %192 = vmatpush1.bf16.msra.mxu0 %v172
    %193 = vmatprep.subr.bf16.mxu0 0
    %194 = vmatpush1.bf16.msra.mxu0 %v173
    %195 = vmatprep.subr.bf16.mxu0 0
    %196 = vmatpush1.bf16.msra.mxu0 %v174
    %197 = vmatprep.subr.bf16.mxu0 0
    %198 = vmatpush1.bf16.msra.mxu0 %v175
    %199 = vmatprep.subr.bf16.mxu0 0
    %200 = vmatpush1.bf16.msra.mxu0 %v176
    %201 = vmatprep.subr.bf16.mxu0 0
    %202 = vmatpush1.bf16.msra.mxu0 0
    %203 = vmatprep.subr.bf16.mxu0 0
    %204 = vmatpush1.bf16.msra.mxu0 0
    %205 = vmatprep.subr.bf16.mxu0 0
    %206 = vmatpush1.bf16.msra.mxu0 0
    %207 = vmatprep.subr.bf16.mxu0 0
    %208 = vmatpush1.bf16.msra.mxu0 0
    %209 = vmatprep.subr.bf16.mxu0 0
    %210 = vmatpush1.bf16.msra.mxu0 0
    %211 = vmatprep.subr.bf16.mxu0 0
    %212 = vmatpush1.bf16.msra.mxu0 0
    %213 = vmatprep.subr.bf16.mxu0 0
    %214 = vmatpush1.bf16.msra.mxu0 0
    %215 = vmatprep.subr.bf16.mxu0 0
    %216 = vmatpush1.bf16.msra.mxu0 0
    %217 = vmatprep.mubr.bf16.mxu0 0
    %218 = vmatmul.mubr.bf16.gmra.mrb[0].mxu0 %v113
    %v219 = vpop.f32.mrb[0].mxu0
    %v220 = vadd.f32 %v135, %v219
    %v221 = vpop.f32.mrb[0].mxu0
    %v222 = vpop.f32.mrb[0].mxu0
    %v223 = vpop.f32.mrb[0].mxu0
    %224 = vdwg.mxu0
    %v225 = vmul.f32 %v220, 0.3
    %v226 = vmax.f32 %v220, %v225
    %v227 = vpack.c.bf16 %v226, %v226
    %v228 = vld [vmem:[%s5] sm:$0xf]
    %v229 = vld [vmem:[%s5 + $0x4] sm:$0xf]
    %v230 = vld [vmem:[%s5 + $0x8] sm:$0xf]
    %v231 = vld [vmem:[%s5 + $0xc] sm:$0xf]
    %v232 = vld [vmem:[%s5 + $0x10] sm:$0xf]
    %v233 = vld [vmem:[%s5 + $0x14] sm:$0xf]
    %v234 = vld [vmem:[%s5 + $0x18] sm:$0xf]
    %v235 = vld [vmem:[%s5 + $0x1c] sm:$0xf]
    %v236 = vld [vmem:[%s5 + $0x20] sm:$0xf]
    %v237 = vld [vmem:[%s5 + $0x24] sm:$0xf]
    %v238 = vld [vmem:[%s5 + $0x28] sm:$0xf]
    %v239 = vld [vmem:[%s5 + $0x2c] sm:$0xf]
    %v240 = vld [vmem:[%s5 + $0x30] sm:$0xf]
    %v241 = vld [vmem:[%s5 + $0x34] sm:$0xf]
    %v242 = vld [vmem:[%s5 + $0x38] sm:$0xf]
    %v243 = vld [vmem:[%s5 + $0x3c] sm:$0xf]
    %v244 = vld [vmem:[%s6] sm:$0x1]
    %v246 = vlaneseq
    %v247 = vshrl.u32 %v246, 7
    %v248 = vsub.s32 0, %v247
    %v249 = vrot.slane %v244, %v248
    %v267 = vunpack.c.l.b16 %v228
    %v268 = vunpack.c.l.b16 %v229
    %v269 = vunpack.c.l.b16 %v230
    %v270 = vunpack.c.l.b16 %v231
    %v271 = vunpack.c.l.b16 %v232
    %v272 = vunpack.c.l.b16 %v233
    %v273 = vunpack.c.l.b16 %v234
    %v274 = vunpack.c.l.b16 %v235
    %v275 = vunpack.c.l.b16 %v236
    %v276 = vunpack.c.l.b16 %v237
    %v277 = vunpack.c.l.b16 %v238
    %v278 = vunpack.c.l.b16 %v239
    %v279 = vunpack.c.l.b16 %v240
    %v280 = vunpack.c.l.b16 %v241
    %v281 = vunpack.c.l.b16 %v242
    %v282 = vunpack.c.l.b16 %v243
    %v283 = vpack.c.b16 %v268, %v267
    %v284 = vpack.c.b16 %v270, %v269
    %v285 = vpack.c.b16 %v272, %v271
    %v286 = vpack.c.b16 %v274, %v273
    %v287 = vpack.c.b16 %v276, %v275
    %v288 = vpack.c.b16 %v278, %v277
    %v289 = vpack.c.b16 %v280, %v279
    %v290 = vpack.c.b16 %v282, %v281
    %299 = vmatprep.subr.bf16.mxu0 0
    %300 = vmatpush1.bf16.msra.mxu0 %v283
    %301 = vmatprep.subr.bf16.mxu0 0
    %302 = vmatpush1.bf16.msra.mxu0 %v284
    %303 = vmatprep.subr.bf16.mxu0 0
    %304 = vmatpush1.bf16.msra.mxu0 %v285
    %305 = vmatprep.subr.bf16.mxu0 0
    %306 = vmatpush1.bf16.msra.mxu0 %v286
    %307 = vmatprep.subr.bf16.mxu0 0
    %308 = vmatpush1.bf16.msra.mxu0 %v287
    %309 = vmatprep.subr.bf16.mxu0 0
    %310 = vmatpush1.bf16.msra.mxu0 %v288
    %311 = vmatprep.subr.bf16.mxu0 0
    %312 = vmatpush1.bf16.msra.mxu0 %v289
    %313 = vmatprep.subr.bf16.mxu0 0
    %314 = vmatpush1.bf16.msra.mxu0 %v290
    %315 = vmatprep.subr.bf16.mxu0 0
    %316 = vmatpush1.bf16.msra.mxu0 0
    %317 = vmatprep.subr.bf16.mxu0 0
    %318 = vmatpush1.bf16.msra.mxu0 0
    %319 = vmatprep.subr.bf16.mxu0 0
    %320 = vmatpush1.bf16.msra.mxu0 0
    %321 = vmatprep.subr.bf16.mxu0 0
    %322 = vmatpush1.bf16.msra.mxu0 0
    %323 = vmatprep.subr.bf16.mxu0 0
    %324 = vmatpush1.bf16.msra.mxu0 0
    %325 = vmatprep.subr.bf16.mxu0 0
    %326 = vmatpush1.bf16.msra.mxu0 0
    %327 = vmatprep.subr.bf16.mxu0 0
    %328 = vmatpush1.bf16.msra.mxu0 0
    %329 = vmatprep.subr.bf16.mxu0 0
    %330 = vmatpush1.bf16.msra.mxu0 0
    %331 = vmatprep.mubr.bf16.mxu0 0
    %332 = vmatmul.mubr.bf16.gmra.mrb[0].mxu0 %v227
    %v333 = vpop.f32.mrb[0].mxu0
    %v334 = vadd.f32 %v249, %v333
    %v335 = vpop.f32.mrb[0].mxu0
    %v336 = vpop.f32.mrb[0].mxu0
    %v337 = vpop.f32.mrb[0].mxu0
    %338 = vdwg.mxu0
    %v339 = vmax.f32 %v334, -30.0
    %v340 = vmin.f32 %v339, 30.0
    %v341 = vsub.f32 0.0, %v340
    %v342 = vmul.f32 %v341, 1.442695
    %v343 = vpow.pop %v342
    %v344 = vadd.f32 %v343, 1.0
    %v345 = vrcp.pop %v344
    %vm346 = vcmask 64512
    %347 = vst.msk [vmem:[#allocation5] sm:$0xff] %vm346, %v345
    // Predicated region
    $region34: #{tpu_custom_call.1} parent=1 // pred_check
      _
    $region35: #{tpu_custom_call.1} parent=1 // pred_check_branch
      %349 = sbr.rel (0) target = $region37
    $region36: #{tpu_custom_call.1} parent=1 // pred_region
      %s351 = ssub.s32 128, 128
      %352 = vsyncadd [#allocation4], %s351
      %s354 = sshll.u32 [#allocation5], 4
      %s355 = int_to_ptr.vmem [resolvable:$true] %s354
      %357 = dma.vmem_to_hbm [thread:$0]  %s355, 128, %s7, [#allocation4]
    $region37: #{tpu_custom_call.1} parent=1 // pred_fallthru
      _
    // Predicated region
    $region38: #{tpu_custom_call.1} parent=1 // pred_check
      _
    $region39: #{tpu_custom_call.1} parent=1 // pred_check_branch
      %359 = sbr.rel (0) target = $region41
    $region40: #{tpu_custom_call.1} parent=1 // pred_region
      %360 = dma.done [#allocation4], 128
    $region41: #{tpu_custom_call.1} parent=1 // pred_fallthru
      _
    %361 = vsyncpa [#allocation3], 1
    %362 = vsyncpa [#allocation4], 1

</llo_original>
